<compile_context>
chip_gen: v5e
topology: v5e:2x2
jax: 0.10.0
libtpu: 0.0.40
codegen_flags: <defaults>
</compile_context>

<pallas_src>
import jax
import jax.numpy as jnp
from jax.experimental import pallas as pl
from jax.experimental.pallas import tpu as pltpu

EPS = 1e-5            # nn.BatchNorm2d default eps
_MISH_CLAMP = 20.0    # matches PyTorch softplus threshold


# ---------------------------------------------------------------------------
# Helpers
# ---------------------------------------------------------------------------
def _round_up(x, m):
    return (x + m - 1) // m * m


def _vmem_capacity_bytes():
    try:
        return int(pltpu.get_tpu_info().vmem_capacity_bytes)
    except Exception:
        return 64 * 1024 * 1024   # v7x-safe fallback


def _pick_tile(hw_pad, bytes_per_lane, budget_bytes, max_tile=4096):
    """Largest tile t (multiple of 128, t | hw_pad, t <= max_tile) within budget."""
    q = hw_pad // 128
    best = 128
    for k in range(1, q + 1):
        if q % k:
            continue
        t = 128 * k
        if t > max_tile:
            break
        if t * bytes_per_lane <= budget_bytes:
            best = t
    return best


def _mish(y):
    # mish(y) = y * tanh(softplus(y)); with t = exp(min(y, 20)):
    #   tanh(softplus(y)) = t*(t+2) / (t*(t+2) + 2)
    # The clamp keeps den finite; the Newton step on the approx reciprocal keeps
    # f32 accuracy (so no trailing compare/select is needed: for y > 20 the
    # ratio rounds to 1 and mish == y).  On v7x (where pass 2 can become
    # VALU-bound) the Newton step may be dropped at ~2e-4 relative error.
    t = jnp.exp(jnp.minimum(y, _MISH_CLAMP))
    num = t * (t + 2.0)
    den = num + 2.0
    inv = pl.reciprocal(den, approx=True)
    inv = inv * (2.0 - den * inv)          # one Newton step -> f32 accuracy
    return y * (num * inv)


# ---------------------------------------------------------------------------
# Fused fast path: stats + normalize + Mish in one VMEM-resident kernel
# ---------------------------------------------------------------------------
def _make_fused_kernel(num_inputs, inv_count, pad_total):
    def kernel(*refs):
        g_refs = refs[:num_inputs]
        b_refs = refs[num_inputs:2 * num_inputs]
        x_refs = refs[2 * num_inputs:3 * num_inputs]
        o_ref = refs[3 * num_inputs]

        parts = []
        for g_ref, b_ref, x_ref in zip(g_refs, b_refs, x_refs):
            x = x_ref[...]                                            # (n, ci, hwp)
            s = jnp.sum(jnp.sum(x, axis=2, keepdims=True), axis=0)    # (ci, 1)
            mean = s * inv_count          # padded lanes are zero -> sum unaffected
            d = x - mean[None]
            q = jnp.sum(jnp.sum(d * d, axis=2, keepdims=True), axis=0)
            # padded lanes contributed mean^2 each -> remove analytically
            var = jnp.maximum((q - pad_total * mean * mean) * inv_count, 0.0)
            inv_std = jax.lax.rsqrt(var + EPS)
            scale = g_ref[...] * inv_std
            shift = b_ref[...] - mean * scale
            parts.append(_mish(x * scale[None] + shift[None]))
        o_ref[...] = parts[0] if num_inputs == 1 else jnp.concatenate(parts, axis=1)

    return kernel


# ---------------------------------------------------------------------------
# Pass 1 (two-pass path): per-(n, input) partial shifted sum / sum-of-squares
# ---------------------------------------------------------------------------
def _make_stats_kernel(num_inputs, tile):
    """The per-input (C_i, 256) output block is the accumulator: lanes 0-127
    hold the running shifted sum, lanes 128-255 the running sum of squares.
    Lane reduction is done with chunked VALU adds in registers, so there is no
    (C, tile) scratch read-modify-write in the hot loop."""
    n_chunks = tile // 128

    def kernel(*refs):
        k_refs = refs[:num_inputs]
        x_refs = refs[num_inputs:2 * num_inputs]
        out_refs = refs[2 * num_inputs:3 * num_inputs]
        t_id = pl.program_id(1)

        for k_ref, x_ref, o_ref in zip(k_refs, x_refs, out_refs):
            d = x_ref[...] - k_ref[...]                   # (ci, tile)
            d2 = d * d
            s = d[:, 0:128]
            q = d2[:, 0:128]
            for j in range(1, n_chunks):                  # chunked lane reduce
                lo = j * 128
                s = s + d[:, lo:lo + 128]
                q = q + d2[:, lo:lo + 128]
            upd = jnp.concatenate([s, q], axis=1)         # (ci, 256), lane-aligned

            @pl.when(t_id == 0)
            def _set(o_ref=o_ref, upd=upd):
                o_ref[...] = upd

            @pl.when(t_id != 0)
            def _acc(o_ref=o_ref, upd=upd):
                o_ref[...] += upd

    return kernel


# ---------------------------------------------------------------------------
# Pass 2 (two-pass path): normalize + Mish
# ---------------------------------------------------------------------------
def _make_norm_mish_kernel(c_sizes, c_offsets, aligned):
    num_inputs = len(c_sizes)

    def kernel(*refs):
        scale_refs = refs[:num_inputs]
        shift_refs = refs[num_inputs:2 * num_inputs]
        x_refs = refs[2 * num_inputs:3 * num_inputs]
        o_ref = refs[3 * num_inputs]

        parts = []
        for sc_ref, sh_ref, x_ref, ci, off in zip(
                scale_refs, shift_refs, x_refs, c_sizes, c_offsets):
            y = x_ref[...] * sc_ref[...] + sh_ref[...]
            act = _mish(y)
            if aligned:
                o_ref[off:off + ci, :] = act              # sublane-aligned view
            else:
                parts.append(act)
        if not aligned:
            o_ref[...] = parts[0] if num_inputs == 1 else jnp.concatenate(parts, axis=0)

    return kernel


# ---------------------------------------------------------------------------
# Wrapper
# ---------------------------------------------------------------------------
def merge_layer(inputs, gamma, beta, *, force_two_pass=False):
    """inputs: list of NCHW float32 arrays (same N,H,W); gamma/beta: (C_total,).

    Equivalent to torch: Mish(BatchNorm2d(cat(inputs, dim=1))) with
    training-mode (batch) statistics.
    """
    n, _, h, w = inputs[0].shape
    for x in inputs:
        assert x.shape[0] == n and x.shape[2:] == (h, w)
    c_sizes = [int(x.shape[1]) for x in inputs]
    c_offsets = []
    off = 0
    for ci in c_sizes:
        c_offsets.append(off)
        off += ci
    c = off
    assert gamma.shape == (c,) and beta.shape == (c,)
    num_inputs = len(inputs)

    hw = h * w
    hw_pad = _round_up(hw, 128)
    m = n * hw                           # true element count per channel
    inv_count = 1.0 / float(m)
    pad_total = float(n * (hw_pad - hw))

    # Free relayout NCHW -> (N, C_i, H*W); zero-pad spatial to a lane multiple.
    xs = [x.reshape(n, ci, hw).astype(jnp.float32) for x, ci in zip(inputs, c_sizes)]
    xs_p = [jnp.pad(x, ((0, 0), (0, 0), (0, hw_pad - hw))) if hw_pad > hw else x
            for x in xs]

    gamma = gamma.astype(jnp.float32)
    beta = beta.astype(jnp.float32)
    g_parts = [gamma[o:o + ci].reshape(ci, 1) for o, ci in zip(c_offsets, c_sizes)]
    b_parts = [beta[o:o + ci].reshape(ci, 1) for o, ci in zip(c_offsets, c_sizes)]

    # Generation-aware VMEM budget (<=48 MiB on v7x, <=96 MiB on v5e/v6e).
    vmem_cap = _vmem_capacity_bytes()
    vmem_budget = int(vmem_cap * 0.75)

    x_bytes = 4 * n * c * hw_pad
    use_fused = (not force_two_pass) and (6 * x_bytes <= vmem_budget)

    if use_fused:
        # ---- fused single-sweep path (removes the second HBM read of x) ----
        out = pl.pallas_call(
            _make_fused_kernel(num_inputs, inv_count, pad_total),
            out_shape=jax.ShapeDtypeStruct((n, c, hw_pad), jnp.float32),
            grid_spec=pltpu.PrefetchScalarGridSpec(
                num_scalar_prefetch=0,
                grid=(1,),
                in_specs=(
                    [pl.BlockSpec((ci, 1), lambda i: (0, 0)) for ci in c_sizes]
                    + [pl.BlockSpec((ci, 1), lambda i: (0, 0)) for ci in c_sizes]
                    + [pl.BlockSpec((n, ci, hw_pad), lambda i: (0, 0, 0))
                       for ci in c_sizes]),
                out_specs=pl.BlockSpec((n, c, hw_pad), lambda i: (0, 0, 0))),
            compiler_params=pltpu.CompilerParams(
                dimension_semantics=("arbitrary",),
                vmem_limit_bytes=vmem_budget),
        )(*g_parts, *b_parts, *xs_p)
    else:
        # ---- pass 1: partial (shifted) sums, N axis megacore-parallel -------
        # Per-channel shift point k (numerical conditioning for the one-pass
        # variance) is computed from a tiny unpadded slice in plain JAX so it
        # is identical on every grid step / core.
        ks = min(hw, 128)
        k_parts = [jnp.mean(x[0, :, :ks], axis=1, keepdims=True) for x in xs]

        tile1 = _pick_tile(hw_pad, bytes_per_lane=8 * c,
                           budget_bytes=vmem_budget // 2)
        t1 = hw_pad // tile1

        partials = pl.pallas_call(
            _make_stats_kernel(num_inputs, tile1),
            out_shape=tuple(jax.ShapeDtypeStruct((n, ci, 256), jnp.float32)
                            for ci in c_sizes),
            grid_spec=pltpu.PrefetchScalarGridSpec(
                num_scalar_prefetch=0,
                grid=(n, t1),
                in_specs=(
                    [pl.BlockSpec((ci, 1), lambda ni, ti: (0, 0)) for ci in c_sizes]
                    + [pl.BlockSpec((None, ci, tile1), lambda ni, ti: (ni, 0, ti))
                       for ci in c_sizes]),
                out_specs=[pl.BlockSpec((None, ci, 256), lambda ni, ti: (ni, 0, 0))
                           for ci in c_sizes]),
            compiler_params=pltpu.CompilerParams(
                dimension_semantics=("parallel", "arbitrary"),
                vmem_limit_bytes=vmem_budget),
        )(*k_parts, *xs_p)
        if num_inputs == 1 and not isinstance(partials, (tuple, list)):
            partials = (partials,)

        # ---- finalize (tiny, plain JAX): partials -> scale / shift ----------
        scale_parts, shift_parts = [], []
        for part, k_i, g_i, b_i in zip(partials, k_parts, g_parts, b_parts):
            tot = jnp.sum(part, axis=0)                       # (ci, 256)
            k_flat = k_i[:, 0]
            # remove contribution of the zero-padded lanes analytically
            s = jnp.sum(tot[:, :128], axis=1) + pad_total * k_flat
            q = jnp.sum(tot[:, 128:], axis=1) - pad_total * k_flat * k_flat
            mean_d = s * inv_count
            var = jnp.maximum(q * inv_count - mean_d * mean_d, 0.0)
            mean = k_flat + mean_d
            inv_std = jax.lax.rsqrt(var + EPS)
            scale = g_i[:, 0] * inv_std
            scale_parts.append(scale.reshape(-1, 1))
            shift_parts.append((b_i[:, 0] - mean * scale).reshape(-1, 1))

        # ---- pass 2: normalize + Mish (megacore-parallel, lane-dense out) ---
        tile2 = _pick_tile(hw_pad, bytes_per_lane=20 * c,
                           budget_bytes=vmem_budget // 2)
        t2 = hw_pad // tile2
        # Deeper buffering only pays off for small tiles on a non-trivial grid.
        buffered = (tile2 <= 256) and (n * t2 >= 4)
        aligned = all(ci % 8 == 0 for ci in c_sizes)

        def _x_spec(ci):
            if buffered:
                return pl.BlockSpec((None, ci, tile2), lambda ni, ti: (ni, 0, ti),
                                    pipeline_mode=pl.Buffered(3))
            return pl.BlockSpec((None, ci, tile2), lambda ni, ti: (ni, 0, ti))

        out = pl.pallas_call(
            _make_norm_mish_kernel(tuple(c_sizes), tuple(c_offsets), aligned),
            out_shape=jax.ShapeDtypeStruct((n, c, hw_pad), jnp.float32),
            grid_spec=pltpu.PrefetchScalarGridSpec(
                num_scalar_prefetch=0,
                grid=(n, t2),
                in_specs=(
                    [pl.BlockSpec((ci, 1), lambda ni, ti: (0, 0)) for ci in c_sizes]
                    + [pl.BlockSpec((ci, 1), lambda ni, ti: (0, 0)) for ci in c_sizes]
                    + [_x_spec(ci) for ci in c_sizes]),
                out_specs=pl.BlockSpec((None, c, tile2), lambda ni, ti: (ni, 0, ti))),
            compiler_params=pltpu.CompilerParams(
                dimension_semantics=("parallel", "parallel"),
                vmem_limit_bytes=vmem_budget),
        )(*scale_parts, *shift_parts, *xs_p)

    if hw_pad > hw:
        out = out[:, :, :hw]
    return out.reshape(n, c, h, w)


# ---------------------------------------------------------------------------
# Reference (pure JAX) for verification
# ---------------------------------------------------------------------------
def _reference(inputs, gamma, beta):
    x = jnp.concatenate(inputs, axis=1)
    mean = jnp.mean(x, axis=(0, 2, 3), keepdims=True)
    var = jnp.mean((x - mean) ** 2, axis=(0, 2, 3), keepdims=True)
    y = (x - mean) * jax.lax.rsqrt(var + EPS)
    y = y * gamma[None, :, None, None] + beta[None, :, None, None]
    return y * jnp.tanh(jax.nn.softplus(y))


if __name__ == "__main__":
    key = jax.random.PRNGKey(0)
    k1, k2, k3, k4, k5, k6, k7, k8 = jax.random.split(key, 8)

    fused_fn = jax.jit(lambda xs, g, b: merge_layer(xs, g, b))
    twopass_fn = jax.jit(lambda xs, g, b: merge_layer(xs, g, b, force_two_pass=True))

    def _check(out, ref):
        err = float(jnp.max(jnp.abs(out - ref)))
        assert jnp.allclose(out, ref, atol=1e-4, rtol=1e-4), err

    # Case 1: lane-aligned spatial (16*16 = 256), two inputs of 2 channels each.
    a = jax.random.normal(k1, (2, 2, 16, 16), dtype=jnp.float32)
    b = jax.random.normal(k2, (2, 2, 16, 16), dtype=jnp.float32)
    g1 = 1.0 + 0.1 * jax.random.normal(k3, (4,), dtype=jnp.float32)
    b1 = 0.1 * jax.random.normal(k4, (4,), dtype=jnp.float32)
    ref1 = _reference([a, b], g1, b1)
    out1_f = jax.block_until_ready(fused_fn([a, b], g1, b1))
    out1_t = jax.block_until_ready(twopass_fn([a, b], g1, b1))
    assert out1_f.shape == (2, 4, 16, 16)
    _check(out1_f, ref1)
    _check(out1_t, ref1)

    # Case 2: non-multiple-of-128 spatial (14*14 = 196) and odd channel split.
    c1 = jax.random.normal(k5, (2, 3, 14, 14), dtype=jnp.float32)
    c2 = jax.random.normal(k6, (2, 5, 14, 14), dtype=jnp.float32)
    g2 = 1.0 + 0.1 * jax.random.normal(k7, (8,), dtype=jnp.float32)
    b2 = 0.1 * jax.random.normal(k8, (8,), dtype=jnp.float32)
    ref2 = _reference([c1, c2], g2, b2)
    out2_f = jax.block_until_ready(fused_fn([c1, c2], g2, b2))
    out2_t = jax.block_until_ready(twopass_fn([c1, c2], g2, b2))
    assert out2_f.shape == (2, 8, 14, 14)
    _check(out2_f, ref2)
    _check(out2_t, ref2)

    # Case 3: sublane-aligned channel counts (8 + 8) -> direct-slice store path.
    d1 = jax.random.normal(k1, (2, 8, 16, 16), dtype=jnp.float32)
    d2 = jax.random.normal(k2, (2, 8, 16, 16), dtype=jnp.float32)
    g3 = 1.0 + 0.1 * jax.random.normal(k3, (16,), dtype=jnp.float32)
    b3 = 0.1 * jax.random.normal(k4, (16,), dtype=jnp.float32)
    ref3 = _reference([d1, d2], g3, b3)
    out3_t = jax.block_until_ready(twopass_fn([d1, d2], g3, b3))
    assert out3_t.shape == (2, 16, 16, 16)
    _check(out3_t, ref3)

    print("KERNEL_OK")
</pallas_src>

<mosaic_0001>
module attributes {stable_mosaic.version = 11 : i64} {
  func.func @kernel(%arg0: i32, %arg1: memref<2x1xf32, #tpu.memory_space<vmem>>, %arg2: memref<2x1xf32, #tpu.memory_space<vmem>>, %arg3: memref<2x1xf32, #tpu.memory_space<vmem>>, %arg4: memref<2x1xf32, #tpu.memory_space<vmem>>, %arg5: memref<2x2x256xf32, #tpu.memory_space<vmem>>, %arg6: memref<2x2x256xf32, #tpu.memory_space<vmem>>, %arg7: memref<2x4x256xf32, #tpu.memory_space<vmem>>) attributes {dimension_semantics = [#tpu.dimension_semantics<arbitrary>], iteration_bounds = array<i64: 1>, scalar_prefetch = 0 : i64, scratch_operands = 0 : i64, tpu.core_type = #tpu.core_type<tc>, window_params = [{pipeline_mode = #tpu.pipeline_mode<synchronous>, transform_indices = @transform_0, window_bounds = array<i64: 2, 1>}, {pipeline_mode = #tpu.pipeline_mode<synchronous>, transform_indices = @transform_1, window_bounds = array<i64: 2, 1>}, {pipeline_mode = #tpu.pipeline_mode<synchronous>, transform_indices = @transform_2, window_bounds = array<i64: 2, 1>}, {pipeline_mode = #tpu.pipeline_mode<synchronous>, transform_indices = @transform_3, window_bounds = array<i64: 2, 1>}, {pipeline_mode = #tpu.pipeline_mode<synchronous>, transform_indices = @transform_4, window_bounds = array<i64: 2, 2, 256>}, {pipeline_mode = #tpu.pipeline_mode<synchronous>, transform_indices = @transform_5, window_bounds = array<i64: 2, 2, 256>}, {pipeline_mode = #tpu.pipeline_mode<synchronous>, transform_indices = @transform_6, window_bounds = array<i64: 2, 4, 256>}]} {
    %c0 = arith.constant 0 : index
    %c0_0 = arith.constant 0 : index
    %c0_1 = arith.constant 0 : index
    %0 = vector.load %arg5[%c0, %c0_0, %c0_1] : memref<2x2x256xf32, #tpu.memory_space<vmem>>, vector<2x2x256xf32>
    %cst = arith.constant dense<0.000000e+00> : vector<2x2xf32>
    %1 = vector.multi_reduction <add>, %0, %cst [2] : vector<2x2x256xf32> to vector<2x2xf32>
    %2 = vector.shape_cast %1 : vector<2x2xf32> to vector<2x2x1xf32>
    %cst_2 = arith.constant dense<0.000000e+00> : vector<2x1xf32>
    %3 = vector.multi_reduction <add>, %2, %cst_2 [0] : vector<2x2x1xf32> to vector<2x1xf32>
    %cst_3 = arith.constant 0.001953125 : f32
    %4 = vector.broadcast %cst_3 : f32 to vector<2x1xf32>
    %5 = arith.mulf %3, %4 : vector<2x1xf32>
    %6 = vector.shape_cast %5 : vector<2x1xf32> to vector<1x2x1xf32>
    %7 = vector.broadcast %6 : vector<1x2x1xf32> to vector<2x2x256xf32>
    %8 = arith.subf %0, %7 : vector<2x2x256xf32>
    %9 = arith.mulf %8, %8 : vector<2x2x256xf32>
    %cst_4 = arith.constant dense<0.000000e+00> : vector<2x2xf32>
    %10 = vector.multi_reduction <add>, %9, %cst_4 [2] : vector<2x2x256xf32> to vector<2x2xf32>
    %11 = vector.shape_cast %10 : vector<2x2xf32> to vector<2x2x1xf32>
    %cst_5 = arith.constant dense<0.000000e+00> : vector<2x1xf32>
    %12 = vector.multi_reduction <add>, %11, %cst_5 [0] : vector<2x2x1xf32> to vector<2x1xf32>
    %cst_6 = arith.constant 0.000000e+00 : f32
    %13 = vector.broadcast %cst_6 : f32 to vector<2x1xf32>
    %14 = arith.mulf %13, %5 : vector<2x1xf32>
    %15 = arith.mulf %14, %5 : vector<2x1xf32>
    %16 = arith.subf %12, %15 : vector<2x1xf32>
    %cst_7 = arith.constant 0.001953125 : f32
    %17 = vector.broadcast %cst_7 : f32 to vector<2x1xf32>
    %18 = arith.mulf %16, %17 : vector<2x1xf32>
    %cst_8 = arith.constant 0.000000e+00 : f32
    %19 = vector.broadcast %cst_8 : f32 to vector<2x1xf32>
    %20 = arith.maximumf %18, %19 : vector<2x1xf32>
    %cst_9 = arith.constant 9.99999974E-6 : f32
    %21 = vector.broadcast %cst_9 : f32 to vector<2x1xf32>
    %22 = arith.addf %20, %21 : vector<2x1xf32>
    %23 = math.rsqrt %22 : vector<2x1xf32>
    %c0_10 = arith.constant 0 : index
    %c0_11 = arith.constant 0 : index
    %24 = vector.load %arg1[%c0_10, %c0_11] : memref<2x1xf32, #tpu.memory_space<vmem>>, vector<2x1xf32>
    %25 = arith.mulf %24, %23 : vector<2x1xf32>
    %c0_12 = arith.constant 0 : index
    %c0_13 = arith.constant 0 : index
    %26 = vector.load %arg3[%c0_12, %c0_13] : memref<2x1xf32, #tpu.memory_space<vmem>>, vector<2x1xf32>
    %27 = arith.mulf %5, %25 : vector<2x1xf32>
    %28 = arith.subf %26, %27 : vector<2x1xf32>
    %29 = vector.shape_cast %25 : vector<2x1xf32> to vector<1x2x1xf32>
    %30 = vector.broadcast %29 : vector<1x2x1xf32> to vector<2x2x256xf32>
    %31 = arith.mulf %0, %30 : vector<2x2x256xf32>
    %32 = vector.shape_cast %28 : vector<2x1xf32> to vector<1x2x1xf32>
    %33 = vector.broadcast %32 : vector<1x2x1xf32> to vector<2x2x256xf32>
    %34 = arith.addf %31, %33 : vector<2x2x256xf32>
    %cst_14 = arith.constant 2.000000e+01 : f32
    %35 = vector.broadcast %cst_14 : f32 to vector<2x2x256xf32>
    %36 = arith.minimumf %34, %35 : vector<2x2x256xf32>
    %37 = math.exp %36 : vector<2x2x256xf32>
    %cst_15 = arith.constant 2.000000e+00 : f32
    %38 = vector.broadcast %cst_15 : f32 to vector<2x2x256xf32>
    %39 = arith.addf %37, %38 : vector<2x2x256xf32>
    %40 = arith.mulf %37, %39 : vector<2x2x256xf32>
    %cst_16 = arith.constant 2.000000e+00 : f32
    %41 = vector.broadcast %cst_16 : f32 to vector<2x2x256xf32>
    %42 = arith.addf %40, %41 : vector<2x2x256xf32>
    %43 = tpu.reciprocal %42 {approx = true} : vector<2x2x256xf32> -> vector<2x2x256xf32>
    %44 = arith.mulf %42, %43 : vector<2x2x256xf32>
    %cst_17 = arith.constant 2.000000e+00 : f32
    %45 = vector.broadcast %cst_17 : f32 to vector<2x2x256xf32>
    %46 = arith.subf %45, %44 : vector<2x2x256xf32>
    %47 = arith.mulf %43, %46 : vector<2x2x256xf32>
    %48 = arith.mulf %40, %47 : vector<2x2x256xf32>
    %49 = arith.mulf %34, %48 : vector<2x2x256xf32>
    %c0_18 = arith.constant 0 : index
    %c0_19 = arith.constant 0 : index
    %c0_20 = arith.constant 0 : index
    %50 = vector.load %arg6[%c0_18, %c0_19, %c0_20] : memref<2x2x256xf32, #tpu.memory_space<vmem>>, vector<2x2x256xf32>
    %cst_21 = arith.constant dense<0.000000e+00> : vector<2x2xf32>
    %51 = vector.multi_reduction <add>, %50, %cst_21 [2] : vector<2x2x256xf32> to vector<2x2xf32>
    %52 = vector.shape_cast %51 : vector<2x2xf32> to vector<2x2x1xf32>
    %cst_22 = arith.constant dense<0.000000e+00> : vector<2x1xf32>
    %53 = vector.multi_reduction <add>, %52, %cst_22 [0] : vector<2x2x1xf32> to vector<2x1xf32>
    %cst_23 = arith.constant 0.001953125 : f32
    %54 = vector.broadcast %cst_23 : f32 to vector<2x1xf32>
    %55 = arith.mulf %53, %54 : vector<2x1xf32>
    %56 = vector.shape_cast %55 : vector<2x1xf32> to vector<1x2x1xf32>
    %57 = vector.broadcast %56 : vector<1x2x1xf32> to vector<2x2x256xf32>
    %58 = arith.subf %50, %57 : vector<2x2x256xf32>
    %59 = arith.mulf %58, %58 : vector<2x2x256xf32>
    %cst_24 = arith.constant dense<0.000000e+00> : vector<2x2xf32>
    %60 = vector.multi_reduction <add>, %59, %cst_24 [2] : vector<2x2x256xf32> to vector<2x2xf32>
    %61 = vector.shape_cast %60 : vector<2x2xf32> to vector<2x2x1xf32>
    %cst_25 = arith.constant dense<0.000000e+00> : vector<2x1xf32>
    %62 = vector.multi_reduction <add>, %61, %cst_25 [0] : vector<2x2x1xf32> to vector<2x1xf32>
    %cst_26 = arith.constant 0.000000e+00 : f32
    %63 = vector.broadcast %cst_26 : f32 to vector<2x1xf32>
    %64 = arith.mulf %63, %55 : vector<2x1xf32>
    %65 = arith.mulf %64, %55 : vector<2x1xf32>
    %66 = arith.subf %62, %65 : vector<2x1xf32>
    %cst_27 = arith.constant 0.001953125 : f32
    %67 = vector.broadcast %cst_27 : f32 to vector<2x1xf32>
    %68 = arith.mulf %66, %67 : vector<2x1xf32>
    %cst_28 = arith.constant 0.000000e+00 : f32
    %69 = vector.broadcast %cst_28 : f32 to vector<2x1xf32>
    %70 = arith.maximumf %68, %69 : vector<2x1xf32>
    %cst_29 = arith.constant 9.99999974E-6 : f32
    %71 = vector.broadcast %cst_29 : f32 to vector<2x1xf32>
    %72 = arith.addf %70, %71 : vector<2x1xf32>
    %73 = math.rsqrt %72 : vector<2x1xf32>
    %c0_30 = arith.constant 0 : index
    %c0_31 = arith.constant 0 : index
    %74 = vector.load %arg2[%c0_30, %c0_31] : memref<2x1xf32, #tpu.memory_space<vmem>>, vector<2x1xf32>
    %75 = arith.mulf %74, %73 : vector<2x1xf32>
    %c0_32 = arith.constant 0 : index
    %c0_33 = arith.constant 0 : index
    %76 = vector.load %arg4[%c0_32, %c0_33] : memref<2x1xf32, #tpu.memory_space<vmem>>, vector<2x1xf32>
    %77 = arith.mulf %55, %75 : vector<2x1xf32>
    %78 = arith.subf %76, %77 : vector<2x1xf32>
    %79 = vector.shape_cast %75 : vector<2x1xf32> to vector<1x2x1xf32>
    %80 = vector.broadcast %79 : vector<1x2x1xf32> to vector<2x2x256xf32>
    %81 = arith.mulf %50, %80 : vector<2x2x256xf32>
    %82 = vector.shape_cast %78 : vector<2x1xf32> to vector<1x2x1xf32>
    %83 = vector.broadcast %82 : vector<1x2x1xf32> to vector<2x2x256xf32>
    %84 = arith.addf %81, %83 : vector<2x2x256xf32>
    %cst_34 = arith.constant 2.000000e+01 : f32
    %85 = vector.broadcast %cst_34 : f32 to vector<2x2x256xf32>
    %86 = arith.minimumf %84, %85 : vector<2x2x256xf32>
    %87 = math.exp %86 : vector<2x2x256xf32>
    %cst_35 = arith.constant 2.000000e+00 : f32
    %88 = vector.broadcast %cst_35 : f32 to vector<2x2x256xf32>
    %89 = arith.addf %87, %88 : vector<2x2x256xf32>
    %90 = arith.mulf %87, %89 : vector<2x2x256xf32>
    %cst_36 = arith.constant 2.000000e+00 : f32
    %91 = vector.broadcast %cst_36 : f32 to vector<2x2x256xf32>
    %92 = arith.addf %90, %91 : vector<2x2x256xf32>
    %93 = tpu.reciprocal %92 {approx = true} : vector<2x2x256xf32> -> vector<2x2x256xf32>
    %94 = arith.mulf %92, %93 : vector<2x2x256xf32>
    %cst_37 = arith.constant 2.000000e+00 : f32
    %95 = vector.broadcast %cst_37 : f32 to vector<2x2x256xf32>
    %96 = arith.subf %95, %94 : vector<2x2x256xf32>
    %97 = arith.mulf %93, %96 : vector<2x2x256xf32>
    %98 = arith.mulf %90, %97 : vector<2x2x256xf32>
    %99 = arith.mulf %84, %98 : vector<2x2x256xf32>
    %100 = tpu.concatenate %49, %99 in 1 : vector<2x2x256xf32>, vector<2x2x256xf32> -> vector<2x4x256xf32>
    %c0_38 = arith.constant 0 : index
    %c0_39 = arith.constant 0 : index
    %c0_40 = arith.constant 0 : index
    %101 = vector.load %arg7[%c0_38, %c0_39, %c0_40] : memref<2x4x256xf32, #tpu.memory_space<vmem>>, vector<2x4x256xf32>
    tpu.vector_store %arg7[%c0_38, %c0_39, %c0_40], %100 {strides = array<i32>} : memref<2x4x256xf32, #tpu.memory_space<vmem>>, vector<2x4x256xf32>,
    return
  }
  func.func @transform_0(%arg0: i32) -> (i32, i32) {
    %c0_i32 = arith.constant 0 : i32
    %c0_i32_0 = arith.constant 0 : i32
    %c0_i32_1 = arith.constant 0 : i32
    return %c0_i32, %c0_i32_0 : i32, i32
  }
  func.func @transform_1(%arg0: i32) -> (i32, i32) {
    %c0_i32 = arith.constant 0 : i32
    %c0_i32_0 = arith.constant 0 : i32
    %c0_i32_1 = arith.constant 0 : i32
    return %c0_i32, %c0_i32_0 : i32, i32
  }
  func.func @transform_2(%arg0: i32) -> (i32, i32) {
    %c0_i32 = arith.constant 0 : i32
    %c0_i32_0 = arith.constant 0 : i32
    %c0_i32_1 = arith.constant 0 : i32
    return %c0_i32, %c0_i32_0 : i32, i32
  }
  func.func @transform_3(%arg0: i32) -> (i32, i32) {
    %c0_i32 = arith.constant 0 : i32
    %c0_i32_0 = arith.constant 0 : i32
    %c0_i32_1 = arith.constant 0 : i32
    return %c0_i32, %c0_i32_0 : i32, i32
  }
  func.func @transform_4(%arg0: i32) -> (i32, i32, i32) {
    %c0_i32 = arith.constant 0 : i32
    %c0_i32_0 = arith.constant 0 : i32
    %c0_i32_1 = arith.constant 0 : i32
    %c0_i32_2 = arith.constant 0 : i32
    return %c0_i32, %c0_i32_0, %c0_i32_1 : i32, i32, i32
  }
  func.func @transform_5(%arg0: i32) -> (i32, i32, i32) {
    %c0_i32 = arith.constant 0 : i32
    %c0_i32_0 = arith.constant 0 : i32
    %c0_i32_1 = arith.constant 0 : i32
    %c0_i32_2 = arith.constant 0 : i32
    return %c0_i32, %c0_i32_0, %c0_i32_1 : i32, i32, i32
  }
  func.func @transform_6(%arg0: i32) -> (i32, i32, i32) {
    %c0_i32 = arith.constant 0 : i32
    %c0_i32_0 = arith.constant 0 : i32
    %c0_i32_1 = arith.constant 0 : i32
    %c0_i32_2 = arith.constant 0 : i32
    return %c0_i32, %c0_i32_0, %c0_i32_1 : i32, i32, i32
  }
}

</mosaic_0001>

<llo_original>
// kernel: _lambda_.1
$region0: #{_lambda_.1}
  #allocation0 [shape = 'u32[]', space=smem, size = 0x4, offset = 0x4, fixed_abs, tag = 'smem constant byte address 0x4 - core index']
  #allocation1 [shape = 'u32[72,128]{1,0:T(1,128)}', space=vmem, size = 0x9000, scoped, tag = 'internal scratch']
  %s0 = inlined_call_operand.vmem [shape: f32[2,1], index: 0, kind: input, shape index: {}]
  %s1 = inlined_call_operand.vmem [shape: f32[2,1], index: 1, kind: input, shape index: {}]
  %s2 = inlined_call_operand.vmem [shape: f32[2,1], index: 2, kind: input, shape index: {}]
  %s3 = inlined_call_operand.vmem [shape: f32[2,1], index: 3, kind: input, shape index: {}]
  %s4 = inlined_call_operand.vmem [shape: f32[2,2,256], index: 4, kind: input, shape index: {}]
  %s5 = inlined_call_operand.vmem [shape: f32[2,2,256], index: 5, kind: input, shape index: {}]
  %s6 = inlined_call_operand.vmem [shape: f32[2,4,256], index: 6, kind: output, shape index: {}]
  %s7 = sld [smem:[#allocation0]]
  $region34: #{_lambda_.1} parent=0
    _
  %s9 = ssub.s32 1, %s7
  %s10 = scalar_select 0, %s9, %s7
  // Predicated region
  $region2: #{_lambda_.1} parent=0 // pred_check
    _
  $region3: #{_lambda_.1} parent=0 // pred_check_branch
    %12 = sbr.rel (0) target = $region5
  $region4: #{_lambda_.1} parent=0 // pred_region
    _
  $region5: #{_lambda_.1} parent=0 // pred_fallthru
    _
  // Predicated region
  $region6: #{_lambda_.1} parent=0 // pred_check
    _
  $region7: #{_lambda_.1} parent=0 // pred_check_branch
    %14 = sbr.rel (0) target = $region9
  $region8: #{_lambda_.1} parent=0 // pred_region
    _
  $region9: #{_lambda_.1} parent=0 // pred_fallthru
    _
  // Predicated region
  $region10: #{_lambda_.1} parent=0 // pred_check
    _
  $region11: #{_lambda_.1} parent=0 // pred_check_branch
    %16 = sbr.rel (0) target = $region13
  $region12: #{_lambda_.1} parent=0 // pred_region
    _
  $region13: #{_lambda_.1} parent=0 // pred_fallthru
    _
  // Predicated region
  $region14: #{_lambda_.1} parent=0 // pred_check
    _
  $region15: #{_lambda_.1} parent=0 // pred_check_branch
    %18 = sbr.rel (0) target = $region17
  $region16: #{_lambda_.1} parent=0 // pred_region
    _
  $region17: #{_lambda_.1} parent=0 // pred_fallthru
    _
  // Predicated region
  $region18: #{_lambda_.1} parent=0 // pred_check
    _
  $region19: #{_lambda_.1} parent=0 // pred_check_branch
    %20 = sbr.rel (0) target = $region21
  $region20: #{_lambda_.1} parent=0 // pred_region
    _
  $region21: #{_lambda_.1} parent=0 // pred_fallthru
    _
  // Predicated region
  $region22: #{_lambda_.1} parent=0 // pred_check
    _
  $region23: #{_lambda_.1} parent=0 // pred_check_branch
    %22 = sbr.rel (0) target = $region25
  $region24: #{_lambda_.1} parent=0 // pred_region
    _
  $region25: #{_lambda_.1} parent=0 // pred_fallthru
    _
  %v23 = vld [vmem:[%s4] sm:$0xf]
  %v24 = vld [vmem:[%s4 + $0x4] sm:$0xf]
  %27 = vst [vmem:[#allocation1] ss:$4 sm:$0xff] %v23
  %v28 = vld.sshfl [vmem:[#allocation1] sm:$0xff pattern:$0x73625140]
  %v29 = vld.sshfl [vmem:[#allocation1 + $0x8] sm:$0xff pattern:$0x73625140]
  %s30 = scalar_lea.vmem [#allocation1], 32
  %31 = vst [vmem:[%s30] ss:$4 sm:$0xff] %v24
  %v32 = vld.sshfl [vmem:[#allocation1 + $0x20] sm:$0xff pattern:$0x73625140]
  %v33 = vld.sshfl [vmem:[#allocation1 + $0x28] sm:$0xff pattern:$0x73625140]
  %vm38 = vcmask 1041408
  %v39 = vsel %vm38, %v28, 0.0
  %v40 = vsel %vm38, %v29, 0.0
  %v41 = vadd.f32 %v39, %v40
  %42 = vadd.xlane.f32.xlu0 %v41
  %v43 = vpop.xlane.xlu0 %42
  %v44 = vsel %vm38, %v32, 0.0
  %v45 = vsel %vm38, %v33, 0.0
  %v46 = vadd.f32 %v44, %v45
  %47 = vadd.xlane.f32.xlu0 %v46
  %v48 = vpop.xlane.xlu0 %47
  %v49 = vsel %vm38, %v43, 0.0
  %v50 = vsel %vm38, %v48, 0.0
  %v51 = vadd.f32 %v49, %v50
  %v52 = vmul.f32 %v51, 0.001953125
  %v55 = vunpack.c.l.s4 269488144
  %v56 = vunpack.c.0.s8 %v55
  %v57 = vperm.slane %v52, %v56
  %v59 = vsub.f32 %v23, %v57
  %v60 = vsub.f32 %v24, %v57
  %v61 = vmul.f32 %v59, %v59
  %v62 = vmul.f32 %v60, %v60
  %65 = vst [vmem:[#allocation1] ss:$4 sm:$0xff] %v61
  %v66 = vld.sshfl [vmem:[#allocation1] sm:$0xff pattern:$0x73625140]
  %v67 = vld.sshfl [vmem:[#allocation1 + $0x8] sm:$0xff pattern:$0x73625140]
  %s68 = scalar_lea.vmem [#allocation1], 32
  %69 = vst [vmem:[%s68] ss:$4 sm:$0xff] %v62
  %v70 = vld.sshfl [vmem:[#allocation1 + $0x20] sm:$0xff pattern:$0x73625140]
  %v71 = vld.sshfl [vmem:[#allocation1 + $0x28] sm:$0xff pattern:$0x73625140]
  %v76 = vsel %vm38, %v66, 0.0
  %v77 = vsel %vm38, %v67, 0.0
  %v78 = vadd.f32 %v76, %v77
  %79 = vadd.xlane.f32.xlu0 %v78
  %v80 = vpop.xlane.xlu0 %79
  %v81 = vsel %vm38, %v70, 0.0
  %v82 = vsel %vm38, %v71, 0.0
  %v83 = vadd.f32 %v81, %v82
  %84 = vadd.xlane.f32.xlu0 %v83
  %v85 = vpop.xlane.xlu0 %84
  %v86 = vsel %vm38, %v80, 0.0
  %v87 = vsel %vm38, %v85, 0.0
  %v88 = vadd.f32 %v86, %v87
  %v89 = vmul.f32 %v52, 0.0
  %v90 = vmul.f32 %v89, %v52
  %v91 = vsub.f32 %v88, %v90
  %v92 = vmul.f32 %v91, 0.001953125
  %v93 = vmax.f32 %v92, 0.0
  %v94 = vadd.f32 %v93, 1e-05
  %v95 = vrsqrt.pop %v94
  %v96 = vmul.f32 %v95, %v94
  %v97 = vmul.f32 %v96, %v95
  %v98 = vmul.f32 0.5, %v97
  %v99 = vsub.f32 1.5, %v98
  %v100 = vmul.f32 %v95, %v99
  %vm101 = vweird.f32 %v94
  %vm102 = vweird.f32 %v95
  %vm103 = vmor %vm101, %vm102
  %v104 = vsel %vm103, %v95, %v100
  %v105 = vld [vmem:[%s0] sm:$0x3]
  %v106 = vmul.f32 %v105, %v104
  %v107 = vld [vmem:[%s2] sm:$0x3]
  %v108 = vmul.f32 %v52, %v106
  %v109 = vsub.f32 %v107, %v108
  %111 = vset.pattern.permute.xlu0 0
  %112 = vperm.xlu0 %111, %v106
  %v113 = vpop.permute.xlu0 %112
  %v115 = vunpack.c.l.s4 269488144
  %v116 = vunpack.c.0.s8 %v115
  %v117 = vperm.slane %v113, %v116
  %v119 = vmul.f32 %v23, %v117
  %v120 = vmul.f32 %v24, %v117
  %122 = vset.pattern.permute.xlu0 0
  %123 = vperm.xlu0 %122, %v109
  %v124 = vpop.permute.xlu0 %123
  %v126 = vunpack.c.l.s4 269488144
  %v127 = vunpack.c.0.s8 %v126
  %v128 = vperm.slane %v124, %v127
  %v130 = vadd.f32 %v119, %v128
  %v131 = vadd.f32 %v120, %v128
  %v132 = vmin.f32 %v130, 20.0
  %v133 = vmin.f32 %v131, 20.0
  %v134 = vmul.f32 %v132, 1.442695
  %v135 = vpow.pop %v134
  %v136 = vmul.f32 %v133, 1.442695
  %v137 = vpow.pop %v136
  %v138 = vadd.f32 %v135, 2.0
  %v139 = vadd.f32 %v137, 2.0
  %v140 = vmul.f32 %v135, %v138
  %v141 = vmul.f32 %v137, %v139
  %v142 = vadd.f32 %v140, 2.0
  %v143 = vadd.f32 %v141, 2.0
  %v144 = vrcp.pop %v142
  %v145 = vrcp.pop %v143
  %v146 = vmul.f32 %v142, %v144
  %v147 = vmul.f32 %v143, %v145
  %v148 = vsub.f32 2.0, %v146
  %v149 = vsub.f32 2.0, %v147
  %v150 = vmul.f32 %v144, %v148
  %v151 = vmul.f32 %v145, %v149
  %v152 = vmul.f32 %v140, %v150
  %v153 = vmul.f32 %v141, %v151
  %v154 = vmul.f32 %v130, %v152
  %v155 = vmul.f32 %v131, %v153
  %v156 = vld [vmem:[%s5] sm:$0xf]
  %v157 = vld [vmem:[%s5 + $0x4] sm:$0xf]
  %160 = vst [vmem:[#allocation1] ss:$4 sm:$0xff] %v156
  %v161 = vld.sshfl [vmem:[#allocation1] sm:$0xff pattern:$0x73625140]
  %v162 = vld.sshfl [vmem:[#allocation1 + $0x8] sm:$0xff pattern:$0x73625140]
  %s163 = scalar_lea.vmem [#allocation1], 32
  %164 = vst [vmem:[%s163] ss:$4 sm:$0xff] %v157
  %v165 = vld.sshfl [vmem:[#allocation1 + $0x20] sm:$0xff pattern:$0x73625140]
  %v166 = vld.sshfl [vmem:[#allocation1 + $0x28] sm:$0xff pattern:$0x73625140]
  %v171 = vsel %vm38, %v161, 0.0
  %v172 = vsel %vm38, %v162, 0.0
  %v173 = vadd.f32 %v171, %v172
  %174 = vadd.xlane.f32.xlu0 %v173
  %v175 = vpop.xlane.xlu0 %174
  %v176 = vsel %vm38, %v165, 0.0
  %v177 = vsel %vm38, %v166, 0.0
  %v178 = vadd.f32 %v176, %v177
  %179 = vadd.xlane.f32.xlu0 %v178
  %v180 = vpop.xlane.xlu0 %179
  %v181 = vsel %vm38, %v175, 0.0
  %v182 = vsel %vm38, %v180, 0.0
  %v183 = vadd.f32 %v181, %v182
  %v184 = vmul.f32 %v183, 0.001953125
  %v187 = vunpack.c.l.s4 269488144
  %v188 = vunpack.c.0.s8 %v187
  %v189 = vperm.slane %v184, %v188
  %v191 = vsub.f32 %v156, %v189
  %v192 = vsub.f32 %v157, %v189
  %v193 = vmul.f32 %v191, %v191
  %v194 = vmul.f32 %v192, %v192
  %197 = vst [vmem:[#allocation1] ss:$4 sm:$0xff] %v193
  %v198 = vld.sshfl [vmem:[#allocation1] sm:$0xff pattern:$0x73625140]
  %v199 = vld.sshfl [vmem:[#allocation1 + $0x8] sm:$0xff pattern:$0x73625140]
  %s200 = scalar_lea.vmem [#allocation1], 32
  %201 = vst [vmem:[%s200] ss:$4 sm:$0xff] %v194
  %v202 = vld.sshfl [vmem:[#allocation1 + $0x20] sm:$0xff pattern:$0x73625140]
  %v203 = vld.sshfl [vmem:[#allocation1 + $0x28] sm:$0xff pattern:$0x73625140]
  %v208 = vsel %vm38, %v198, 0.0
  %v209 = vsel %vm38, %v199, 0.0
  %v210 = vadd.f32 %v208, %v209
  %211 = vadd.xlane.f32.xlu0 %v210
  %v212 = vpop.xlane.xlu0 %211
  %v213 = vsel %vm38, %v202, 0.0
  %v214 = vsel %vm38, %v203, 0.0
  %v215 = vadd.f32 %v213, %v214
  %216 = vadd.xlane.f32.xlu0 %v215
  %v217 = vpop.xlane.xlu0 %216
  %v218 = vsel %vm38, %v212, 0.0
  %v219 = vsel %vm38, %v217, 0.0
  %v220 = vadd.f32 %v218, %v219
  %v221 = vmul.f32 %v184, 0.0
  %v222 = vmul.f32 %v221, %v184
  %v223 = vsub.f32 %v220, %v222
  %v224 = vmul.f32 %v223, 0.001953125
  %v225 = vmax.f32 %v224, 0.0
  %v226 = vadd.f32 %v225, 1e-05
  %v227 = vrsqrt.pop %v226
  %v228 = vmul.f32 %v227, %v226
  %v229 = vmul.f32 %v228, %v227
  %v230 = vmul.f32 0.5, %v229
  %v231 = vsub.f32 1.5, %v230
  %v232 = vmul.f32 %v227, %v231
  %vm233 = vweird.f32 %v226
  %vm234 = vweird.f32 %v227
  %vm235 = vmor %vm233, %vm234
  %v236 = vsel %vm235, %v227, %v232
  %v237 = vld [vmem:[%s1] sm:$0x3]
  %v238 = vmul.f32 %v237, %v236
  %v239 = vld [vmem:[%s3] sm:$0x3]
  %v240 = vmul.f32 %v184, %v238
  %v241 = vsub.f32 %v239, %v240
  %243 = vset.pattern.permute.xlu0 0
  %244 = vperm.xlu0 %243, %v238
  %v245 = vpop.permute.xlu0 %244
  %v247 = vunpack.c.l.s4 269488144
  %v248 = vunpack.c.0.s8 %v247
  %v249 = vperm.slane %v245, %v248
  %v251 = vmul.f32 %v156, %v249
  %v252 = vmul.f32 %v157, %v249
  %254 = vset.pattern.permute.xlu0 0
  %255 = vperm.xlu0 %254, %v241
  %v256 = vpop.permute.xlu0 %255
  %v258 = vunpack.c.l.s4 269488144
  %v259 = vunpack.c.0.s8 %v258
  %v260 = vperm.slane %v256, %v259
  %v262 = vadd.f32 %v251, %v260
  %v263 = vadd.f32 %v252, %v260
  %v264 = vmin.f32 %v262, 20.0
  %v265 = vmin.f32 %v263, 20.0
  %v266 = vmul.f32 %v264, 1.442695
  %v267 = vpow.pop %v266
  %v268 = vmul.f32 %v265, 1.442695
  %v269 = vpow.pop %v268
  %v270 = vadd.f32 %v267, 2.0
  %v271 = vadd.f32 %v269, 2.0
  %v272 = vmul.f32 %v267, %v270
  %v273 = vmul.f32 %v269, %v271
  %v274 = vadd.f32 %v272, 2.0
  %v275 = vadd.f32 %v273, 2.0
  %v276 = vrcp.pop %v274
  %v277 = vrcp.pop %v275
  %v278 = vmul.f32 %v274, %v276
  %v279 = vmul.f32 %v275, %v277
  %v280 = vsub.f32 2.0, %v278
  %v281 = vsub.f32 2.0, %v279
  %v282 = vmul.f32 %v276, %v280
  %v283 = vmul.f32 %v277, %v281
  %v284 = vmul.f32 %v272, %v282
  %v285 = vmul.f32 %v273, %v283
  %v286 = vmul.f32 %v262, %v284
  %v287 = vmul.f32 %v263, %v285
  %290 = vst [vmem:[#allocation1] ss:$4 sm:$0xff] %v154
  %v291 = vld.sshfl [vmem:[#allocation1] sm:$0xff pattern:$0x73625140]
  %v292 = vld.sshfl [vmem:[#allocation1 + $0x8] sm:$0xff pattern:$0x73625140]
  %s293 = scalar_lea.vmem [#allocation1], 32
  %294 = vst [vmem:[%s293] ss:$4 sm:$0xff] %v155
  %v295 = vld.sshfl [vmem:[#allocation1 + $0x20] sm:$0xff pattern:$0x73625140]
  %v296 = vld.sshfl [vmem:[#allocation1 + $0x28] sm:$0xff pattern:$0x73625140]
  %s303 = scalar_lea.vmem [#allocation1], 1
  %304 = vst [vmem:[%s303] ss:$4 sm:$0xff] %v286
  %v305 = vld.sshfl [vmem:[#allocation1] sm:$0xff pattern:$0x73625140]
  %v306 = vld.sshfl [vmem:[#allocation1 + $0x8] sm:$0xff pattern:$0x73625140]
  %s307 = scalar_lea.vmem [#allocation1], 33
  %308 = vst [vmem:[%s307] ss:$4 sm:$0xff] %v287
  %v309 = vld.sshfl [vmem:[#allocation1 + $0x20] sm:$0xff pattern:$0x73625140]
  %v310 = vld.sshfl [vmem:[#allocation1 + $0x28] sm:$0xff pattern:$0x73625140]
  %v315 = vsel %vm38, %v291, %v305
  %v316 = vsel %vm38, %v292, %v306
  %v317 = vsel %vm38, %v295, %v309
  %v318 = vsel %vm38, %v296, %v310
  %v323 = vrot.slane %v316, 4
  %v324 = vrot.slane %v318, 4
  %vm325 = vcmask 1043456
  %v326 = vsel %vm325, %v315, %v323
  %v327 = vsel %vm325, %v317, %v324
  %330 = vst [vmem:[%s6] sm:$0xff] %v326
  %331 = vst [vmem:[%s6 + $0x8] sm:$0xff] %v327
  // Predicated region
  $region26: #{_lambda_.1} parent=0 // pred_check
    _
  $region27: #{_lambda_.1} parent=0 // pred_check_branch
    %333 = sbr.rel (0) target = $region29
  $region28: #{_lambda_.1} parent=0 // pred_region
    _
  $region29: #{_lambda_.1} parent=0 // pred_fallthru
    _
  // Predicated region
  $region30: #{_lambda_.1} parent=0 // pred_check
    _
  $region31: #{_lambda_.1} parent=0 // pred_check_branch
    %335 = sbr.rel (0) target = $region33
  $region32: #{_lambda_.1} parent=0 // pred_region
    _
  $region33: #{_lambda_.1} parent=0 // pred_fallthru
    _

</llo_original>
